<compile_context>
chip_gen: v6e
topology: v6e:2x2x1
jax: 0.10.0
libtpu: 0.0.40
codegen_flags: <defaults>
</compile_context>

<pallas_src>
import math

import jax
import jax.numpy as jnp
from jax import lax
from jax.experimental import pallas as pl
from jax.experimental.pallas import tpu as pltpu


def _mha_head_kernel(x_ref, wq_ref, wk_ref, wv_ref, out_ref, arg_ref):
    """One grid step = one attention head.

    x_ref:   [S, D]      (same block for every step -> resident in VMEM)
    wq_ref:  [1, D, Dk]  (this head's Q weights, 1/sqrt(d_k) already folded in)
    wk_ref:  [1, D, Dk]
    wv_ref:  [1, D, Dk]
    out_ref: [1, S, Dk]  (this head's block of new_embed)
    arg_ref: [1, S, S]   (this head's block of the raw scaled scores)
    """
    x = x_ref[...]                                                     # [S, D]

    q = jnp.dot(x, wq_ref[0], preferred_element_type=jnp.float32)     # [S, Dk] (pre-scaled)
    k = jnp.dot(x, wk_ref[0], preferred_element_type=jnp.float32)     # [S, Dk]
    v = jnp.dot(x, wv_ref[0], preferred_element_type=jnp.float32)     # [S, Dk]

    # Q @ K^T without an explicit transpose: contract dim 1 of both operands.
    s = lax.dot_general(q, k, (((1,), (1,)), ((), ())),
                        preferred_element_type=jnp.float32)            # [S, S]
    arg_ref[0] = s.astype(arg_ref.dtype)

    # Numerically-stable softmax along the key axis (torch dim=1 on [S, S]).
    m = jnp.max(s, axis=-1, keepdims=True)
    p = jnp.exp(s - m)
    denom = jnp.sum(p, axis=-1, keepdims=True)
    p = p / denom   # exact divide (approx vrcp previously broke the tolerance)

    out_ref[0] = jnp.dot(p, v, preferred_element_type=jnp.float32).astype(out_ref.dtype)


def multi_head_attention(x, w_q, w_k, w_v, d_model, n_head):
    """x: [S, D]; w_q/w_k/w_v: [H, D, Dk]. Returns (new_embed [H,S,Dk], arg [H,S,S])."""
    S, D = x.shape
    H, _, Dk = w_q.shape
    assert D == d_model and H == n_head and Dk == d_model // n_head

    # Fold the 1/sqrt(d_k) score scale into the Q projection weights (one-time,
    # wrapper-side) instead of a per-grid-step [S, Dk] VPU multiply in-kernel.
    scale = 1.0 / math.sqrt(d_model / n_head)
    w_q_scaled = (w_q * scale).astype(w_q.dtype)

    grid_spec = pltpu.PrefetchScalarGridSpec(
        num_scalar_prefetch=0,
        grid=(H,),  # one step per head: pipelined, and >=2 parallel steps for v7x
        in_specs=[
            pl.BlockSpec((S, D), lambda h: (0, 0)),        # X resident across steps
            pl.BlockSpec((1, D, Dk), lambda h: (h, 0, 0)),  # this head's Wq (scaled)
            pl.BlockSpec((1, D, Dk), lambda h: (h, 0, 0)),  # this head's Wk
            pl.BlockSpec((1, D, Dk), lambda h: (h, 0, 0)),  # this head's Wv
        ],
        out_specs=[
            pl.BlockSpec((1, S, Dk), lambda h: (h, 0, 0)),  # new_embed[h]
            pl.BlockSpec((1, S, S), lambda h: (h, 0, 0)),   # arg[h]
        ],
    )

    out_shapes = (
        jax.ShapeDtypeStruct((H, S, Dk), jnp.float32),
        jax.ShapeDtypeStruct((H, S, S), jnp.float32),
    )

    new_embed, arg = pl.pallas_call(
        _mha_head_kernel,
        out_shape=out_shapes,
        grid_spec=grid_spec,
        compiler_params=pltpu.CompilerParams(
            dimension_semantics=("parallel",)),
    )(x, w_q_scaled, w_k, w_v)

    # Outputs are already in the module's [H, S, Dk] / [H, S, S] layouts: no
    # post-kernel reshape/transpose (the old scores transpose was a real HBM pass).
    return new_embed, arg


def _reference(x, w_q, w_k, w_v, d_model, n_head):
    scale = 1.0 / math.sqrt(d_model / n_head)
    q = jnp.einsum("sd,hdk->hsk", x, w_q)
    k = jnp.einsum("sd,hdk->hsk", x, w_k)
    v = jnp.einsum("sd,hdk->hsk", x, w_v)
    arg = jnp.einsum("hsk,htk->hst", q, k) * scale
    p = jax.nn.softmax(arg, axis=-1)
    out = jnp.einsum("hst,htk->hsk", p, v)
    return out, arg


if __name__ == "__main__":
    # Small shapes consistent with the module: seq=8, d_model=32, n_head=4.
    S, d_model, n_head = 8, 32, 4
    Dk = d_model // n_head

    key = jax.random.PRNGKey(0)
    k_x, k_q, k_k, k_v = jax.random.split(key, 4)
    # Deterministic "torch.randn"-style init, per head.
    x = jax.random.normal(k_x, (S, d_model), dtype=jnp.float32)
    w_q = jax.random.normal(k_q, (n_head, d_model, Dk), dtype=jnp.float32)
    w_k = jax.random.normal(k_k, (n_head, d_model, Dk), dtype=jnp.float32)
    w_v = jax.random.normal(k_v, (n_head, d_model, Dk), dtype=jnp.float32)

    new_embed, arg = multi_head_attention(x, w_q, w_k, w_v, d_model, n_head)
    jax.block_until_ready((new_embed, arg))

    ref_out, ref_arg = _reference(x, w_q, w_k, w_v, d_model, n_head)
    assert new_embed.shape == (n_head, S, Dk)
    assert arg.shape == (n_head, S, S)
    assert jnp.allclose(new_embed, ref_out, atol=1e-3, rtol=1e-3)
    assert jnp.allclose(arg, ref_arg, atol=1e-3, rtol=1e-3)

    print("KERNEL_OK")
</pallas_src>

<mosaic_0001>
module attributes {stable_mosaic.version = 11 : i64} {
  func.func @_mha_head_kernel(%arg0: i32, %arg1: memref<8x32xf32, #tpu.memory_space<vmem>>, %arg2: memref<1x32x8xf32, #tpu.memory_space<vmem>>, %arg3: memref<1x32x8xf32, #tpu.memory_space<vmem>>, %arg4: memref<1x32x8xf32, #tpu.memory_space<vmem>>, %arg5: memref<1x8x8xf32, #tpu.memory_space<vmem>>, %arg6: memref<1x8x8xf32, #tpu.memory_space<vmem>>) attributes {dimension_semantics = [#tpu.dimension_semantics<parallel>], iteration_bounds = array<i64: 4>, scalar_prefetch = 0 : i64, scratch_operands = 0 : i64, tpu.core_type = #tpu.core_type<tc>, window_params = [{pipeline_mode = #tpu.pipeline_mode<synchronous>, transform_indices = @transform_0, window_bounds = array<i64: 8, 32>}, {transform_indices = @transform_1, window_bounds = array<i64: 1, 32, 8>}, {transform_indices = @transform_2, window_bounds = array<i64: 1, 32, 8>}, {transform_indices = @transform_3, window_bounds = array<i64: 1, 32, 8>}, {transform_indices = @transform_4, window_bounds = array<i64: 1, 8, 8>}, {transform_indices = @transform_5, window_bounds = array<i64: 1, 8, 8>}]} {
    %c0 = arith.constant 0 : index
    %c0_0 = arith.constant 0 : index
    %0 = vector.load %arg1[%c0, %c0_0] : memref<8x32xf32, #tpu.memory_space<vmem>>, vector<8x32xf32>
    %c0_1 = arith.constant 0 : index
    %c0_2 = arith.constant 0 : index
    %c0_3 = arith.constant 0 : index
    %1 = vector.load %arg2[%c0_1, %c0_2, %c0_3] : memref<1x32x8xf32, #tpu.memory_space<vmem>>, vector<1x32x8xf32>
    %2 = vector.shape_cast %1 : vector<1x32x8xf32> to vector<32x8xf32>
    %cst = arith.constant dense<0.000000e+00> : vector<8x8xf32>
    %3 = tpu.matmul %0, %2, %cst {dimension_numbers = #tpu.dot_dimension_numbers<[1], [0], [0], [1], [0, 0, 1, 1], [], []>} : vector<8x32xf32>, vector<32x8xf32>, vector<8x8xf32> -> vector<8x8xf32>
    %c0_4 = arith.constant 0 : index
    %c0_5 = arith.constant 0 : index
    %c0_6 = arith.constant 0 : index
    %4 = vector.load %arg3[%c0_4, %c0_5, %c0_6] : memref<1x32x8xf32, #tpu.memory_space<vmem>>, vector<1x32x8xf32>
    %5 = vector.shape_cast %4 : vector<1x32x8xf32> to vector<32x8xf32>
    %cst_7 = arith.constant dense<0.000000e+00> : vector<8x8xf32>
    %6 = tpu.matmul %0, %5, %cst_7 {dimension_numbers = #tpu.dot_dimension_numbers<[1], [0], [0], [1], [0, 0, 1, 1], [], []>} : vector<8x32xf32>, vector<32x8xf32>, vector<8x8xf32> -> vector<8x8xf32>
    %c0_8 = arith.constant 0 : index
    %c0_9 = arith.constant 0 : index
    %c0_10 = arith.constant 0 : index
    %7 = vector.load %arg4[%c0_8, %c0_9, %c0_10] : memref<1x32x8xf32, #tpu.memory_space<vmem>>, vector<1x32x8xf32>
    %8 = vector.shape_cast %7 : vector<1x32x8xf32> to vector<32x8xf32>
    %cst_11 = arith.constant dense<0.000000e+00> : vector<8x8xf32>
    %9 = tpu.matmul %0, %8, %cst_11 {dimension_numbers = #tpu.dot_dimension_numbers<[1], [0], [0], [1], [0, 0, 1, 1], [], []>} : vector<8x32xf32>, vector<32x8xf32>, vector<8x8xf32> -> vector<8x8xf32>
    %cst_12 = arith.constant dense<0.000000e+00> : vector<8x8xf32>
    %10 = tpu.matmul %3, %6, %cst_12 {dimension_numbers = #tpu.dot_dimension_numbers<[1], [1], [0], [0], [0, 0, 1, 0], [], []>} : vector<8x8xf32>, vector<8x8xf32>, vector<8x8xf32> -> vector<8x8xf32>
    %c0_13 = arith.constant 0 : index
    %c0_14 = arith.constant 0 : index
    %c0_15 = arith.constant 0 : index
    %11 = vector.load %arg6[%c0_13, %c0_14, %c0_15] : memref<1x8x8xf32, #tpu.memory_space<vmem>>, vector<1x8x8xf32>
    %12 = vector.shape_cast %11 : vector<1x8x8xf32> to vector<8x8xf32>
    %13 = vector.shape_cast %10 : vector<8x8xf32> to vector<1x8x8xf32>
    tpu.vector_store %arg6[%c0_13, %c0_14, %c0_15], %13 {strides = array<i32>} : memref<1x8x8xf32, #tpu.memory_space<vmem>>, vector<1x8x8xf32>,
    %cst_16 = arith.constant dense<0xFF800000> : vector<8xf32>
    %14 = vector.multi_reduction <maximumf>, %10, %cst_16 [1] : vector<8x8xf32> to vector<8xf32>
    %15 = vector.shape_cast %14 : vector<8xf32> to vector<8x1xf32>
    %16 = vector.broadcast %15 : vector<8x1xf32> to vector<8x8xf32>
    %17 = arith.subf %10, %16 : vector<8x8xf32>
    %18 = math.exp %17 : vector<8x8xf32>
    %cst_17 = arith.constant dense<0.000000e+00> : vector<8xf32>
    %19 = vector.multi_reduction <add>, %18, %cst_17 [1] : vector<8x8xf32> to vector<8xf32>
    %20 = vector.shape_cast %19 : vector<8xf32> to vector<8x1xf32>
    %21 = vector.broadcast %20 : vector<8x1xf32> to vector<8x8xf32>
    %22 = arith.divf %18, %21 : vector<8x8xf32>
    %cst_18 = arith.constant dense<0.000000e+00> : vector<8x8xf32>
    %23 = tpu.matmul %22, %9, %cst_18 {dimension_numbers = #tpu.dot_dimension_numbers<[1], [0], [0], [1], [0, 0, 1, 1], [], []>} : vector<8x8xf32>, vector<8x8xf32>, vector<8x8xf32> -> vector<8x8xf32>
    %c0_19 = arith.constant 0 : index
    %c0_20 = arith.constant 0 : index
    %c0_21 = arith.constant 0 : index
    %24 = vector.load %arg5[%c0_19, %c0_20, %c0_21] : memref<1x8x8xf32, #tpu.memory_space<vmem>>, vector<1x8x8xf32>
    %25 = vector.shape_cast %24 : vector<1x8x8xf32> to vector<8x8xf32>
    %26 = vector.shape_cast %23 : vector<8x8xf32> to vector<1x8x8xf32>
    tpu.vector_store %arg5[%c0_19, %c0_20, %c0_21], %26 {strides = array<i32>} : memref<1x8x8xf32, #tpu.memory_space<vmem>>, vector<1x8x8xf32>,
    return
  }
  func.func @transform_0(%arg0: i32) -> (i32, i32) {
    %c0_i32 = arith.constant 0 : i32
    %c0_i32_0 = arith.constant 0 : i32
    %c0_i32_1 = arith.constant 0 : i32
    return %c0_i32, %c0_i32_0 : i32, i32
  }
  func.func @transform_1(%arg0: i32) -> (i32, i32, i32) {
    %c0_i32 = arith.constant 0 : i32
    %c0_i32_0 = arith.constant 0 : i32
    %c0_i32_1 = arith.constant 0 : i32
    return %arg0, %c0_i32, %c0_i32_0 : i32, i32, i32
  }
  func.func @transform_2(%arg0: i32) -> (i32, i32, i32) {
    %c0_i32 = arith.constant 0 : i32
    %c0_i32_0 = arith.constant 0 : i32
    %c0_i32_1 = arith.constant 0 : i32
    return %arg0, %c0_i32, %c0_i32_0 : i32, i32, i32
  }
  func.func @transform_3(%arg0: i32) -> (i32, i32, i32) {
    %c0_i32 = arith.constant 0 : i32
    %c0_i32_0 = arith.constant 0 : i32
    %c0_i32_1 = arith.constant 0 : i32
    return %arg0, %c0_i32, %c0_i32_0 : i32, i32, i32
  }
  func.func @transform_4(%arg0: i32) -> (i32, i32, i32) {
    %c0_i32 = arith.constant 0 : i32
    %c0_i32_0 = arith.constant 0 : i32
    %c0_i32_1 = arith.constant 0 : i32
    return %arg0, %c0_i32, %c0_i32_0 : i32, i32, i32
  }
  func.func @transform_5(%arg0: i32) -> (i32, i32, i32) {
    %c0_i32 = arith.constant 0 : i32
    %c0_i32_0 = arith.constant 0 : i32
    %c0_i32_1 = arith.constant 0 : i32
    return %arg0, %c0_i32, %c0_i32_0 : i32, i32, i32
  }
}

</mosaic_0001>

<llo_original>
// kernel: tpu_custom_call.1
$region0: #{tpu_custom_call.1}
  #allocation0 [shape = 'u32[]', space=smem, size = 0x4, offset = 0x4, fixed_abs, tag = 'smem constant byte address 0x4 - core index']
  #allocation1 [shape = 'u32[144,128]{1,0:T(1,128)}', space=vmem, size = 0x12000, scoped, tag = 'internal scratch']
  %s0 = inlined_call_operand.vmem [shape: f32[8,32], index: 0, kind: input, shape index: {}]
  %s1 = inlined_call_operand.vmem [shape: f32[4,32,8], index: 1, kind: input, shape index: {}]
  %s2 = inlined_call_operand.vmem [shape: f32[4,32,8], index: 2, kind: input, shape index: {}]
  %s3 = inlined_call_operand.vmem [shape: f32[4,32,8], index: 3, kind: input, shape index: {}]
  %s4 = inlined_call_operand.hbm [shape: f32[4,8,8], index: 4, kind: output, shape index: {0}]
  %s5 = inlined_call_operand.hbm [shape: f32[4,8,8], index: 5, kind: output, shape index: {1}]
  %6 = xla_tuple %s4, %s5
  %s7 = sld [smem:[#allocation0]]
  $region57: #{tpu_custom_call.1} parent=0
    _
  %s9 = ssub.s32 1, %s7
  %s10 = scalar_select 0, %s9, %s7
  $region1: #{tpu_custom_call.1} parent=0
    #allocation2 [shape = 'u8[8192]{0}', space=vmem, size = 0x2000, scoped, tag = 'output window, operand 0']
    #allocation3 [shape = 's32[2]{0}', space=sflag, size = 0x8, scoped, tag = 'scoped memory for tpu_custom_call.1']
    #allocation4 [shape = 'u8[8192]{0}', space=vmem, size = 0x2000, scoped, tag = 'output window, operand 1']
    #allocation5 [shape = 's32[2]{0}', space=sflag, size = 0x8, scoped, tag = 'scoped memory for tpu_custom_call.1']
    %11 = vsyncpa [#allocation3], 0
    %s12 = scalar_lea.sflag [#allocation3], 1
    %13 = vsyncpa %s12, 0
    %14 = vsyncpa [#allocation5], 0
    %s15 = scalar_lea.sflag [#allocation5], 1
    %16 = vsyncpa %s15, 0
    loop: start=0, step=1, limit=6
    $region2: #{tpu_custom_call.1} parent=1 // loop_pre_header
      _
    $region3: #{tpu_custom_call.1} parent=1 // loop_header
      %s18 = sphi 0, %s22
      %p19 = scmp.ge.s32.totalorder %s18, 6
      %s26 = sphi 0, %s26
      %s28 = sphi 0, %s26
      %s29 = sphi 0, %s28
      %s43 = sphi 0, %s29
      %s49 = sphi 0, %s51
      %s52 = sphi 0, %s49
      %s53 = sphi 0, %s52
      %s69 = sphi 0, %s53
      %s75 = sphi 0, %s77
      %s78 = sphi 0, %s75
      %s79 = sphi 0, %s78
      %s95 = sphi 0, %s79
      %s101 = sphi 0, %s103
      %s104 = sphi 0, %s101
      %s105 = sphi 0, %s104
      %s121 = sphi 0, %s105
      %s127 = sphi 0, %s129
      %s130 = sphi 0, %s127
      %s131 = sphi 0, %s130
      %s147 = sphi 0, %s131
      %s153 = sphi 0, %s155
      %s156 = sphi 0, %s153
      %s157 = sphi 0, %s156
      %s173 = sphi 0, %s157
    $region4: #{tpu_custom_call.1} parent=1 // loop_header_branch
      %21 = sbr.rel (%p19) target = $region8
    $region5: #{tpu_custom_call.1} parent=1 // loop_body
      %s23 = ssub.s32 %s18, 1
      %s24 = ssub.s32 %s18, 2
      %s25 = sadd.s32 %s18, 1
      %s27 = sadd.s32 %s26, 1
      %p30 = scmp.eq.s32.totalorder %s18, 3
      %p31 = scmp.ne.s32.totalorder %s26, %s28
      %p32 = scmp.eq.s32.totalorder %s18, 0
      %p33 = por %p31, %p32
      %p34 = scmp.ne.s32.totalorder %s26, %s28
      %p35 = scmp.eq.s32.totalorder %s23, 3
      %p36 = por %p34, %p35
      %p37 = scmp.ne.s32.totalorder %s28, %s29
      %p38 = scmp.eq.s32.totalorder %s23, 0
      %p39 = por %p37, %p38
      %p40 = scmp.ne.s32.totalorder %s28, %s29
      %p41 = scmp.eq.s32.totalorder %s24, 3
      %p42 = por %p40, %p41
      %p44 = scmp.ne.s32.totalorder %s29, %s43
      %p45 = scmp.eq.s32.totalorder %s24, 0
      %p46 = por %p44, %p45
      %s47 = ssub.s32 %s18, %s25
      %p48 = scmp.eq.s32.totalorder %s47, 0
      %s50 = sadd.s32 %s49, 1
      %s51 = scalar_select %p48, %s49, %s50
      %p54 = pneg %p48
      %p55 = scmp.eq.s32.totalorder %s18, 3
      %p56 = por %p54, %p55
      %p57 = scmp.ne.s32.totalorder %s49, %s52
      %p58 = scmp.eq.s32.totalorder %s18, 0
      %p59 = por %p57, %p58
      %p60 = scmp.ne.s32.totalorder %s49, %s52
      %p61 = scmp.eq.s32.totalorder %s23, 3
      %p62 = por %p60, %p61
      %p63 = scmp.ne.s32.totalorder %s52, %s53
      %p64 = scmp.eq.s32.totalorder %s23, 0
      %p65 = por %p63, %p64
      %p66 = scmp.ne.s32.totalorder %s52, %s53
      %p67 = scmp.eq.s32.totalorder %s24, 3
      %p68 = por %p66, %p67
      %p70 = scmp.ne.s32.totalorder %s53, %s69
      %p71 = scmp.eq.s32.totalorder %s24, 0
      %p72 = por %p70, %p71
      %s73 = ssub.s32 %s18, %s25
      %p74 = scmp.eq.s32.totalorder %s73, 0
      %s76 = sadd.s32 %s75, 1
      %s77 = scalar_select %p74, %s75, %s76
      %p80 = pneg %p74
      %p81 = scmp.eq.s32.totalorder %s18, 3
      %p82 = por %p80, %p81
      %p83 = scmp.ne.s32.totalorder %s75, %s78
      %p84 = scmp.eq.s32.totalorder %s18, 0
      %p85 = por %p83, %p84
      %p86 = scmp.ne.s32.totalorder %s75, %s78
      %p87 = scmp.eq.s32.totalorder %s23, 3
      %p88 = por %p86, %p87
      %p89 = scmp.ne.s32.totalorder %s78, %s79
      %p90 = scmp.eq.s32.totalorder %s23, 0
      %p91 = por %p89, %p90
      %p92 = scmp.ne.s32.totalorder %s78, %s79
      %p93 = scmp.eq.s32.totalorder %s24, 3
      %p94 = por %p92, %p93
      %p96 = scmp.ne.s32.totalorder %s79, %s95
      %p97 = scmp.eq.s32.totalorder %s24, 0
      %p98 = por %p96, %p97
      %s99 = ssub.s32 %s18, %s25
      %p100 = scmp.eq.s32.totalorder %s99, 0
      %s102 = sadd.s32 %s101, 1
      %s103 = scalar_select %p100, %s101, %s102
      %p106 = pneg %p100
      %p107 = scmp.eq.s32.totalorder %s18, 3
      %p108 = por %p106, %p107
      %p109 = scmp.ne.s32.totalorder %s101, %s104
      %p110 = scmp.eq.s32.totalorder %s18, 0
      %p111 = por %p109, %p110
      %p112 = scmp.ne.s32.totalorder %s101, %s104
      %p113 = scmp.eq.s32.totalorder %s23, 3
      %p114 = por %p112, %p113
      %p115 = scmp.ne.s32.totalorder %s104, %s105
      %p116 = scmp.eq.s32.totalorder %s23, 0
      %p117 = por %p115, %p116
      %p118 = scmp.ne.s32.totalorder %s104, %s105
      %p119 = scmp.eq.s32.totalorder %s24, 3
      %p120 = por %p118, %p119
      %p122 = scmp.ne.s32.totalorder %s105, %s121
      %p123 = scmp.eq.s32.totalorder %s24, 0
      %p124 = por %p122, %p123
      %s125 = ssub.s32 %s18, %s25
      %p126 = scmp.eq.s32.totalorder %s125, 0
      %s128 = sadd.s32 %s127, 1
      %s129 = scalar_select %p126, %s127, %s128
      %p132 = pneg %p126
      %p133 = scmp.eq.s32.totalorder %s18, 3
      %p134 = por %p132, %p133
      %p135 = scmp.ne.s32.totalorder %s127, %s130
      %p136 = scmp.eq.s32.totalorder %s18, 0
      %p137 = por %p135, %p136
      %p138 = scmp.ne.s32.totalorder %s127, %s130
      %p139 = scmp.eq.s32.totalorder %s23, 3
      %p140 = por %p138, %p139
      %p141 = scmp.ne.s32.totalorder %s130, %s131
      %p142 = scmp.eq.s32.totalorder %s23, 0
      %p143 = por %p141, %p142
      %p144 = scmp.ne.s32.totalorder %s130, %s131
      %p145 = scmp.eq.s32.totalorder %s24, 3
      %p146 = por %p144, %p145
      %p148 = scmp.ne.s32.totalorder %s131, %s147
      %p149 = scmp.eq.s32.totalorder %s24, 0
      %p150 = por %p148, %p149
      %s151 = ssub.s32 %s18, %s25
      %p152 = scmp.eq.s32.totalorder %s151, 0
      %s154 = sadd.s32 %s153, 1
      %s155 = scalar_select %p152, %s153, %s154
      %p158 = pneg %p152
      %p159 = scmp.eq.s32.totalorder %s18, 3
      %p160 = por %p158, %p159
      %p161 = scmp.ne.s32.totalorder %s153, %s156
      %p162 = scmp.eq.s32.totalorder %s18, 0
      %p163 = por %p161, %p162
      %p164 = scmp.ne.s32.totalorder %s153, %s156
      %p165 = scmp.eq.s32.totalorder %s23, 3
      %p166 = por %p164, %p165
      %p167 = scmp.ne.s32.totalorder %s156, %s157
      %p168 = scmp.eq.s32.totalorder %s23, 0
      %p169 = por %p167, %p168
      %p170 = scmp.ne.s32.totalorder %s156, %s157
      %p171 = scmp.eq.s32.totalorder %s24, 3
      %p172 = por %p170, %p171
      %p174 = scmp.ne.s32.totalorder %s157, %s173
      %p175 = scmp.eq.s32.totalorder %s24, 0
      %p176 = por %p174, %p175
      %p177 = scmp.le.s32.totalorder 1, %s18
      %p178 = scmp.lt.s32.totalorder %s18, 5
      %p179 = pnand %p177, %p178
      %p180 = pneg %p179
      // Predicated region
      $region9: #{tpu_custom_call.1} parent=5 // pred_check
        _
      $region10: #{tpu_custom_call.1} parent=5 // pred_check_branch
        %182 = sbr.rel (%p179) target = $region12
      $region11: #{tpu_custom_call.1} parent=5 // pred_region
        %s183 = ssub.s32 %s18, 1
        // Predicated region
        $region13: #{tpu_custom_call.1} parent=11 // pred_check
          %p184 = pneg %p39
        $region14: #{tpu_custom_call.1} parent=11 // pred_check_branch
          %186 = sbr.rel (%p184) target = $region16
        $region15: #{tpu_custom_call.1} parent=11 // pred_region
          _
        $region16: #{tpu_custom_call.1} parent=11 // pred_fallthru
          _
      $region12: #{tpu_custom_call.1} parent=5 // pred_fallthru
        _
      %p187 = scmp.lt.s32.totalorder %s18, 4
      // Predicated region
      $region17: #{tpu_custom_call.1} parent=5 // pred_check
        %p188 = pneg %p187
      $region18: #{tpu_custom_call.1} parent=5 // pred_check_branch
        %190 = sbr.rel (%p188) target = $region20
      $region19: #{tpu_custom_call.1} parent=5 // pred_region
        // Predicated region
        $region21: #{tpu_custom_call.1} parent=19 // pred_check
          %p191 = pneg %p59
        $region22: #{tpu_custom_call.1} parent=19 // pred_check_branch
          %193 = sbr.rel (%p191) target = $region24
        $region23: #{tpu_custom_call.1} parent=19 // pred_region
          %p194 = scmp.lt.s32.totalorder %s18, 3
          %s195 = scalar_select %p194, %s18, 3
          %s196 = smul.addr %s195, 4
          %s197 = smul.addr %s196, 8
          %s198 = scalar_lea.vmem %s1, %s197
        $region24: #{tpu_custom_call.1} parent=19 // pred_fallthru
          _
        // Predicated region
        $region25: #{tpu_custom_call.1} parent=19 // pred_check
          %p199 = pneg %p85
        $region26: #{tpu_custom_call.1} parent=19 // pred_check_branch
          %201 = sbr.rel (%p199) target = $region28
        $region27: #{tpu_custom_call.1} parent=19 // pred_region
          %p202 = scmp.lt.s32.totalorder %s18, 3
          %s203 = scalar_select %p202, %s18, 3
          %s204 = smul.addr %s203, 4
          %s205 = smul.addr %s204, 8
          %s206 = scalar_lea.vmem %s2, %s205
        $region28: #{tpu_custom_call.1} parent=19 // pred_fallthru
          _
        // Predicated region
        $region29: #{tpu_custom_call.1} parent=19 // pred_check
          %p207 = pneg %p111
        $region30: #{tpu_custom_call.1} parent=19 // pred_check_branch
          %209 = sbr.rel (%p207) target = $region32
        $region31: #{tpu_custom_call.1} parent=19 // pred_region
          %p210 = scmp.lt.s32.totalorder %s18, 3
          %s211 = scalar_select %p210, %s18, 3
          %s212 = smul.addr %s211, 4
          %s213 = smul.addr %s212, 8
          %s214 = scalar_lea.vmem %s3, %s213
        $region32: #{tpu_custom_call.1} parent=19 // pred_fallthru
          _
      $region20: #{tpu_custom_call.1} parent=5 // pred_fallthru
        _
      %p215 = scmp.le.s32.totalorder 1, %s18
      %p216 = scmp.lt.s32.totalorder %s18, 5
      %p217 = pnand %p215, %p216
      %p218 = pneg %p217
      // Predicated region
      $region33: #{tpu_custom_call.1} parent=5 // pred_check
        _
      $region34: #{tpu_custom_call.1} parent=5 // pred_check_branch
        %220 = sbr.rel (%p217) target = $region36
      $region35: #{tpu_custom_call.1} parent=5 // pred_region
        %s221 = ssub.s32 %s18, 1
        %p222 = pneg %p39
        %p223 = pneg %p36
        %p224 = scmp.lt.s32.totalorder %s23, 3
        %s225 = scalar_select %p224, %s23, 3
        %s226 = smul.addr %s225, 4
        %s227 = smul.addr %s226, 8
        %s228 = scalar_lea.vmem %s1, %s227
        %p229 = pneg %p65
        %p230 = pneg %p62
        %p231 = scmp.lt.s32.totalorder %s23, 3
        %s232 = scalar_select %p231, %s23, 3
        %s233 = smul.addr %s232, 4
        %s234 = smul.addr %s233, 8
        %s235 = scalar_lea.vmem %s2, %s234
        %p236 = pneg %p91
        %p237 = pneg %p88
        %p238 = scmp.lt.s32.totalorder %s23, 3
        %s239 = scalar_select %p238, %s23, 3
        %s240 = smul.addr %s239, 4
        %s241 = smul.addr %s240, 8
        %s242 = scalar_lea.vmem %s3, %s241
        %p243 = pneg %p117
        %p244 = pneg %p114
        %p245 = pneg %p143
        %p246 = pneg %p140
        %s247 = sand.u32 %s130, 1
        %s248 = scalar_lea.sflag [#allocation3], %s247
        %s249 = sand.u32 %s130, 1
        %s250 = smul.addr %s249, 8
        %s251 = scalar_lea.vmem [#allocation2], %s250
        %p252 = pneg %p169
        %p253 = pneg %p166
        %s254 = sand.u32 %s156, 1
        %s255 = scalar_lea.sflag [#allocation5], %s254
        %s256 = sand.u32 %s156, 1
        %s257 = smul.addr %s256, 8
        %s258 = scalar_lea.vmem [#allocation4], %s257
        %p259 = scmp.lt.s32.totalorder %s23, 3
        %s260 = scalar_select %p259, %s23, 3
        %s261 = smul.addr %s260, 4
        %s262 = smul.addr %s261, 8
        %s263 = scalar_lea.vmem %s1, %s262
        %p264 = scmp.lt.s32.totalorder %s23, 3
        %s265 = scalar_select %p264, %s23, 3
        %s266 = smul.addr %s265, 4
        %s267 = smul.addr %s266, 8
        %s268 = scalar_lea.vmem %s2, %s267
        %p269 = scmp.lt.s32.totalorder %s23, 3
        %s270 = scalar_select %p269, %s23, 3
        %s271 = smul.addr %s270, 4
        %s272 = smul.addr %s271, 8
        %s273 = scalar_lea.vmem %s3, %s272
        %v274 = vld [vmem:[%s0] sm:$0xff]
        %v275 = vld [vmem:[%s263] sm:$0xff]
        %v276 = vld [vmem:[%s263 + $0x8] sm:$0xff]
        %v277 = vld [vmem:[%s263 + $0x10] sm:$0xff]
        %v278 = vld [vmem:[%s263 + $0x18] sm:$0xff]
        %vm279 = vcmask 261120
        %v281 = vsel %vm279, %v274, 0
        %283 = vmatprep.subr.mxu0 0.0
        %284 = vmatpush1.msra.mxu0 0.0
        %285 = vmatprep.subr.mxu0 0.0
        %286 = vmatpush1.msra.mxu0 0.0
        %287 = vmatprep.subr.mxu0 0.0
        %288 = vmatpush1.msra.mxu0 0.0
        %289 = vmatprep.subr.mxu0 0.0
        %290 = vmatpush1.msra.mxu0 0.0
        %291 = vmatprep.subr.mxu0 0.0
        %292 = vmatpush1.msra.mxu0 0.0
        %293 = vmatprep.subr.mxu0 0.0
        %294 = vmatpush1.msra.mxu0 0.0
        %295 = vmatprep.subr.mxu0 0.0
        %296 = vmatpush1.msra.mxu0 0.0
        %297 = vmatprep.subr.mxu0 0.0
        %298 = vmatpush1.msra.mxu0 0.0
        %299 = vmatprep.subr.mxu0 0.0
        %300 = vmatpush1.msra.mxu0 0.0
        %301 = vmatprep.subr.mxu0 0.0
        %302 = vmatpush1.msra.mxu0 0.0
        %303 = vmatprep.subr.mxu0 0.0
        %304 = vmatpush1.msra.mxu0 0.0
        %305 = vmatprep.subr.mxu0 0.0
        %306 = vmatpush1.msra.mxu0 0.0
        %307 = vmatprep.subr.mxu0 0.0
        %308 = vmatpush1.msra.mxu0 %v278
        %309 = vmatprep.subr.mxu0 0.0
        %310 = vmatpush1.msra.mxu0 %v277
        %311 = vmatprep.subr.mxu0 0.0
        %312 = vmatpush1.msra.mxu0 %v276
        %313 = vmatprep.subr.mxu0 0.0
        %314 = vmatpush1.msra.mxu0 %v275
        %315 = vmatprep.subr.mxu0 0.0
        %316 = vmatpush2.msra.mxu0 0.0
        %317 = vmatprep.subr.mxu0 0.0
        %318 = vmatpush2.msra.mxu0 0.0
        %319 = vmatprep.subr.mxu0 0.0
        %320 = vmatpush2.msra.mxu0 0.0
        %321 = vmatprep.subr.mxu0 0.0
        %322 = vmatpush2.msra.mxu0 0.0
        %323 = vmatprep.subr.mxu0 0.0
        %324 = vmatpush2.msra.mxu0 0.0
        %325 = vmatprep.subr.mxu0 0.0
        %326 = vmatpush2.msra.mxu0 0.0
        %327 = vmatprep.subr.mxu0 0.0
        %328 = vmatpush2.msra.mxu0 0.0
        %329 = vmatprep.subr.mxu0 0.0
        %330 = vmatpush2.msra.mxu0 0.0
        %331 = vmatprep.subr.mxu0 0.0
        %332 = vmatpush2.msra.mxu0 0.0
        %333 = vmatprep.subr.mxu0 0.0
        %334 = vmatpush2.msra.mxu0 0.0
        %335 = vmatprep.subr.mxu0 0.0
        %336 = vmatpush2.msra.mxu0 0.0
        %337 = vmatprep.subr.mxu0 0.0
        %338 = vmatpush2.msra.mxu0 0.0
        %339 = vmatprep.subr.mxu0 0.0
        %340 = vmatpush2.msra.mxu0 0.0
        %341 = vmatprep.subr.mxu0 0.0
        %342 = vmatpush2.msra.mxu0 0.0
        %343 = vmatprep.subr.mxu0 0.0
        %344 = vmatpush2.msra.mxu0 0.0
        %345 = vmatprep.subr.mxu0 0.0
        %346 = vmatpush2.msra.mxu0 0.0
        %347 = vmatprep.mubr.f32.mxu0 0.0
        %348 = vmatmul.mubr.f32.gmra.mxu0 %v281
        %v349 = vpop.f32.mrf.mxu0
        %v350 = vadd.f32 0.0, %v349
        %v351 = vpop.f32.mrf.mxu0
        %352 = vdwg.mxu0
        %v353 = vld [vmem:[%s268] sm:$0xff]
        %v354 = vld [vmem:[%s268 + $0x8] sm:$0xff]
        %v355 = vld [vmem:[%s268 + $0x10] sm:$0xff]
        %v356 = vld [vmem:[%s268 + $0x18] sm:$0xff]
        %357 = vmatprep.subr.mxu0 0.0
        %358 = vmatpush1.msra.mxu0 0.0
        %359 = vmatprep.subr.mxu0 0.0
        %360 = vmatpush1.msra.mxu0 0.0
        %361 = vmatprep.subr.mxu0 0.0
        %362 = vmatpush1.msra.mxu0 0.0
        %363 = vmatprep.subr.mxu0 0.0
        %364 = vmatpush1.msra.mxu0 0.0
        %365 = vmatprep.subr.mxu0 0.0
        %366 = vmatpush1.msra.mxu0 0.0
        %367 = vmatprep.subr.mxu0 0.0
        %368 = vmatpush1.msra.mxu0 0.0
        %369 = vmatprep.subr.mxu0 0.0
        %370 = vmatpush1.msra.mxu0 0.0
        %371 = vmatprep.subr.mxu0 0.0
        %372 = vmatpush1.msra.mxu0 0.0
        %373 = vmatprep.subr.mxu0 0.0
        %374 = vmatpush1.msra.mxu0 0.0
        %375 = vmatprep.subr.mxu0 0.0
        %376 = vmatpush1.msra.mxu0 0.0
        %377 = vmatprep.subr.mxu0 0.0
        %378 = vmatpush1.msra.mxu0 0.0
        %379 = vmatprep.subr.mxu0 0.0
        %380 = vmatpush1.msra.mxu0 0.0
        %381 = vmatprep.subr.mxu0 0.0
        %382 = vmatpush1.msra.mxu0 %v356
        %383 = vmatprep.subr.mxu0 0.0
        %384 = vmatpush1.msra.mxu0 %v355
        %385 = vmatprep.subr.mxu0 0.0
        %386 = vmatpush1.msra.mxu0 %v354
        %387 = vmatprep.subr.mxu0 0.0
        %388 = vmatpush1.msra.mxu0 %v353
        %389 = vmatprep.subr.mxu0 0.0
        %390 = vmatpush2.msra.mxu0 0.0
        %391 = vmatprep.subr.mxu0 0.0
        %392 = vmatpush2.msra.mxu0 0.0
        %393 = vmatprep.subr.mxu0 0.0
        %394 = vmatpush2.msra.mxu0 0.0
        %395 = vmatprep.subr.mxu0 0.0
        %396 = vmatpush2.msra.mxu0 0.0
        %397 = vmatprep.subr.mxu0 0.0
        %398 = vmatpush2.msra.mxu0 0.0
        %399 = vmatprep.subr.mxu0 0.0
        %400 = vmatpush2.msra.mxu0 0.0
        %401 = vmatprep.subr.mxu0 0.0
        %402 = vmatpush2.msra.mxu0 0.0
        %403 = vmatprep.subr.mxu0 0.0
        %404 = vmatpush2.msra.mxu0 0.0
        %405 = vmatprep.subr.mxu0 0.0
        %406 = vmatpush2.msra.mxu0 0.0
        %407 = vmatprep.subr.mxu0 0.0
        %408 = vmatpush2.msra.mxu0 0.0
        %409 = vmatprep.subr.mxu0 0.0
        %410 = vmatpush2.msra.mxu0 0.0
        %411 = vmatprep.subr.mxu0 0.0
        %412 = vmatpush2.msra.mxu0 0.0
        %413 = vmatprep.subr.mxu0 0.0
        %414 = vmatpush2.msra.mxu0 0.0
        %415 = vmatprep.subr.mxu0 0.0
        %416 = vmatpush2.msra.mxu0 0.0
        %417 = vmatprep.subr.mxu0 0.0
        %418 = vmatpush2.msra.mxu0 0.0
        %419 = vmatprep.subr.mxu0 0.0
        %420 = vmatpush2.msra.mxu0 0.0
        %421 = vmatprep.mubr.f32.mxu0 0.0
        %422 = vmatmul.mubr.f32.gmra.mxu0 %v281
        %v423 = vpop.f32.mrf.mxu0
        %v424 = vadd.f32 0.0, %v423
        %v425 = vpop.f32.mrf.mxu0
        %426 = vdwg.mxu0
        %v427 = vld [vmem:[%s273] sm:$0xff]
        %v428 = vld [vmem:[%s273 + $0x8] sm:$0xff]
        %v429 = vld [vmem:[%s273 + $0x10] sm:$0xff]
        %v430 = vld [vmem:[%s273 + $0x18] sm:$0xff]
        %431 = vmatprep.subr.mxu0 0.0
        %432 = vmatpush1.msra.mxu0 0.0
        %433 = vmatprep.subr.mxu0 0.0
        %434 = vmatpush1.msra.mxu0 0.0
        %435 = vmatprep.subr.mxu0 0.0
        %436 = vmatpush1.msra.mxu0 0.0
        %437 = vmatprep.subr.mxu0 0.0
        %438 = vmatpush1.msra.mxu0 0.0
        %439 = vmatprep.subr.mxu0 0.0
        %440 = vmatpush1.msra.mxu0 0.0
        %441 = vmatprep.subr.mxu0 0.0
        %442 = vmatpush1.msra.mxu0 0.0
        %443 = vmatprep.subr.mxu0 0.0
        %444 = vmatpush1.msra.mxu0 0.0
        %445 = vmatprep.subr.mxu0 0.0
        %446 = vmatpush1.msra.mxu0 0.0
        %447 = vmatprep.subr.mxu0 0.0
        %448 = vmatpush1.msra.mxu0 0.0
        %449 = vmatprep.subr.mxu0 0.0
        %450 = vmatpush1.msra.mxu0 0.0
        %451 = vmatprep.subr.mxu0 0.0
        %452 = vmatpush1.msra.mxu0 0.0
        %453 = vmatprep.subr.mxu0 0.0
        %454 = vmatpush1.msra.mxu0 0.0
        %455 = vmatprep.subr.mxu0 0.0
        %456 = vmatpush1.msra.mxu0 %v430
        %457 = vmatprep.subr.mxu0 0.0
        %458 = vmatpush1.msra.mxu0 %v429
        %459 = vmatprep.subr.mxu0 0.0
        %460 = vmatpush1.msra.mxu0 %v428
        %461 = vmatprep.subr.mxu0 0.0
        %462 = vmatpush1.msra.mxu0 %v427
        %463 = vmatprep.subr.mxu0 0.0
        %464 = vmatpush2.msra.mxu0 0.0
        %465 = vmatprep.subr.mxu0 0.0
        %466 = vmatpush2.msra.mxu0 0.0
        %467 = vmatprep.subr.mxu0 0.0
        %468 = vmatpush2.msra.mxu0 0.0
        %469 = vmatprep.subr.mxu0 0.0
        %470 = vmatpush2.msra.mxu0 0.0
        %471 = vmatprep.subr.mxu0 0.0
        %472 = vmatpush2.msra.mxu0 0.0
        %473 = vmatprep.subr.mxu0 0.0
        %474 = vmatpush2.msra.mxu0 0.0
        %475 = vmatprep.subr.mxu0 0.0
        %476 = vmatpush2.msra.mxu0 0.0
        %477 = vmatprep.subr.mxu0 0.0
        %478 = vmatpush2.msra.mxu0 0.0
        %479 = vmatprep.subr.mxu0 0.0
        %480 = vmatpush2.msra.mxu0 0.0
        %481 = vmatprep.subr.mxu0 0.0
        %482 = vmatpush2.msra.mxu0 0.0
        %483 = vmatprep.subr.mxu0 0.0
        %484 = vmatpush2.msra.mxu0 0.0
        %485 = vmatprep.subr.mxu0 0.0
        %486 = vmatpush2.msra.mxu0 0.0
        %487 = vmatprep.subr.mxu0 0.0
        %488 = vmatpush2.msra.mxu0 0.0
        %489 = vmatprep.subr.mxu0 0.0
        %490 = vmatpush2.msra.mxu0 0.0
        %491 = vmatprep.subr.mxu0 0.0
        %492 = vmatpush2.msra.mxu0 0.0
        %493 = vmatprep.subr.mxu0 0.0
        %494 = vmatpush2.msra.mxu0 0.0
        %495 = vmatprep.mubr.f32.mxu0 0.0
        %496 = vmatmul.mubr.f32.gmra.mxu0 %v281
        %v497 = vpop.f32.mrf.mxu0
        %v498 = vadd.f32 0.0, %v497
        %v499 = vpop.f32.mrf.mxu0
        %500 = vdwg.mxu0
        %vm501 = vcmask 64512
        %v503 = vsel %vm501, %v350, 0
        %v506 = vsel %vm501, %v424, 0
        %508 = vmatprep.subr.mxu0 0.0
        %509 = vmatpush1.xpose.msra.mxu0 0.0
        %510 = vmatprep.subr.mxu0 0.0
        %511 = vmatpush1.xpose.msra.mxu0 0.0
        %512 = vmatprep.subr.mxu0 0.0
        %513 = vmatpush1.xpose.msra.mxu0 0.0
        %514 = vmatprep.subr.mxu0 0.0
        %515 = vmatpush1.xpose.msra.mxu0 0.0
        %516 = vmatprep.subr.mxu0 0.0
        %517 = vmatpush1.xpose.msra.mxu0 0.0
        %518 = vmatprep.subr.mxu0 0.0
        %519 = vmatpush1.xpose.msra.mxu0 0.0
        %520 = vmatprep.subr.mxu0 0.0
        %521 = vmatpush1.xpose.msra.mxu0 0.0
        %522 = vmatprep.subr.mxu0 0.0
        %523 = vmatpush1.xpose.msra.mxu0 0.0
        %524 = vmatprep.subr.mxu0 0.0
        %525 = vmatpush1.xpose.msra.mxu0 0.0
        %526 = vmatprep.subr.mxu0 0.0
        %527 = vmatpush1.xpose.msra.mxu0 0.0
        %528 = vmatprep.subr.mxu0 0.0
        %529 = vmatpush1.xpose.msra.mxu0 0.0
        %530 = vmatprep.subr.mxu0 0.0
        %531 = vmatpush1.xpose.msra.mxu0 0.0
        %532 = vmatprep.subr.mxu0 0.0
        %533 = vmatpush1.xpose.msra.mxu0 0.0
        %534 = vmatprep.subr.mxu0 0.0
        %535 = vmatpush1.xpose.msra.mxu0 0.0
        %536 = vmatprep.subr.mxu0 0.0
        %537 = vmatpush1.xpose.msra.mxu0 0.0
        %538 = vmatprep.subr.mxu0 0.0
        %539 = vmatpush1.xpose.msra.mxu0 %v506
        %540 = vmatprep.subr.mxu0 0.0
        %541 = vmatpush2.xpose.msra.mxu0 0.0
        %542 = vmatprep.subr.mxu0 0.0
        %543 = vmatpush2.xpose.msra.mxu0 0.0
        %544 = vmatprep.subr.mxu0 0.0
        %545 = vmatpush2.xpose.msra.mxu0 0.0
        %546 = vmatprep.subr.mxu0 0.0
        %547 = vmatpush2.xpose.msra.mxu0 0.0
        %548 = vmatprep.subr.mxu0 0.0
        %549 = vmatpush2.xpose.msra.mxu0 0.0
        %550 = vmatprep.subr.mxu0 0.0
        %551 = vmatpush2.xpose.msra.mxu0 0.0
        %552 = vmatprep.subr.mxu0 0.0
        %553 = vmatpush2.xpose.msra.mxu0 0.0
        %554 = vmatprep.subr.mxu0 0.0
        %555 = vmatpush2.xpose.msra.mxu0 0.0
        %556 = vmatprep.subr.mxu0 0.0
        %557 = vmatpush2.xpose.msra.mxu0 0.0
        %558 = vmatprep.subr.mxu0 0.0
        %559 = vmatpush2.xpose.msra.mxu0 0.0
        %560 = vmatprep.subr.mxu0 0.0
        %561 = vmatpush2.xpose.msra.mxu0 0.0
        %562 = vmatprep.subr.mxu0 0.0
        %563 = vmatpush2.xpose.msra.mxu0 0.0
        %564 = vmatprep.subr.mxu0 0.0
        %565 = vmatpush2.xpose.msra.mxu0 0.0
        %566 = vmatprep.subr.mxu0 0.0
        %567 = vmatpush2.xpose.msra.mxu0 0.0
        %568 = vmatprep.subr.mxu0 0.0
        %569 = vmatpush2.xpose.msra.mxu0 0.0
        %570 = vmatprep.subr.mxu0 0.0
        %571 = vmatpush2.xpose.msra.mxu0 0.0
        %572 = vmatprep.mubr.f32.mxu0 0.0
        %573 = vmatmul.mubr.f32.gmra.mxu0 %v503
        %v574 = vpop.f32.mrf.mxu0
        %v575 = vadd.f32 0.0, %v574
        %v576 = vpop.f32.mrf.mxu0
        %577 = vdwg.mxu0
        %578 = vst.msk [vmem:[%s258] sm:$0xff] %vm501, %v575
        %v579 = vsel %vm501, %v575, -inf
        %580 = vmax.xlane.f32.xlu0 %v579
        %v581 = vpop.xlane.xlu0 %580
        %v582 = vsub.f32 %v575, %v581
        %v583 = vmul.f32 %v582, 1.442695
        %v584 = vpow.pop %v583
        %v585 = vsel %vm501, %v584, 0.0
        %586 = vadd.xlane.f32.xlu0 %v585
        %v587 = vpop.xlane.xlu0 %586
        %v588 = vrcp.pop %v587
        %v589 = vmul.f32 %v584, %v588
        %v591 = vsel %vm501, %v589, 0
        %593 = vmatprep.subr.mxu0 0.0
        %594 = vmatpush1.msra.mxu0 0.0
        %595 = vmatprep.subr.mxu0 0.0
        %596 = vmatpush1.msra.mxu0 0.0
        %597 = vmatprep.subr.mxu0 0.0
        %598 = vmatpush1.msra.mxu0 0.0
        %599 = vmatprep.subr.mxu0 0.0
        %600 = vmatpush1.msra.mxu0 0.0
        %601 = vmatprep.subr.mxu0 0.0
        %602 = vmatpush1.msra.mxu0 0.0
        %603 = vmatprep.subr.mxu0 0.0
        %604 = vmatpush1.msra.mxu0 0.0
        %605 = vmatprep.subr.mxu0 0.0
        %606 = vmatpush1.msra.mxu0 0.0
        %607 = vmatprep.subr.mxu0 0.0
        %608 = vmatpush1.msra.mxu0 0.0
        %609 = vmatprep.subr.mxu0 0.0
        %610 = vmatpush1.msra.mxu0 0.0
        %611 = vmatprep.subr.mxu0 0.0
        %612 = vmatpush1.msra.mxu0 0.0
        %613 = vmatprep.subr.mxu0 0.0
        %614 = vmatpush1.msra.mxu0 0.0
        %615 = vmatprep.subr.mxu0 0.0
        %616 = vmatpush1.msra.mxu0 0.0
        %617 = vmatprep.subr.mxu0 0.0
        %618 = vmatpush1.msra.mxu0 0.0
        %619 = vmatprep.subr.mxu0 0.0
        %620 = vmatpush1.msra.mxu0 0.0
        %621 = vmatprep.subr.mxu0 0.0
        %622 = vmatpush1.msra.mxu0 0.0
        %623 = vmatprep.subr.mxu0 0.0
        %624 = vmatpush1.msra.mxu0 %v498
        %625 = vmatprep.subr.mxu0 0.0
        %626 = vmatpush2.msra.mxu0 0.0
        %627 = vmatprep.subr.mxu0 0.0
        %628 = vmatpush2.msra.mxu0 0.0
        %629 = vmatprep.subr.mxu0 0.0
        %630 = vmatpush2.msra.mxu0 0.0
        %631 = vmatprep.subr.mxu0 0.0
        %632 = vmatpush2.msra.mxu0 0.0
        %633 = vmatprep.subr.mxu0 0.0
        %634 = vmatpush2.msra.mxu0 0.0
        %635 = vmatprep.subr.mxu0 0.0
        %636 = vmatpush2.msra.mxu0 0.0
        %637 = vmatprep.subr.mxu0 0.0
        %638 = vmatpush2.msra.mxu0 0.0
        %639 = vmatprep.subr.mxu0 0.0
        %640 = vmatpush2.msra.mxu0 0.0
        %641 = vmatprep.subr.mxu0 0.0
        %642 = vmatpush2.msra.mxu0 0.0
        %643 = vmatprep.subr.mxu0 0.0
        %644 = vmatpush2.msra.mxu0 0.0
        %645 = vmatprep.subr.mxu0 0.0
        %646 = vmatpush2.msra.mxu0 0.0
        %647 = vmatprep.subr.mxu0 0.0
        %648 = vmatpush2.msra.mxu0 0.0
        %649 = vmatprep.subr.mxu0 0.0
        %650 = vmatpush2.msra.mxu0 0.0
        %651 = vmatprep.subr.mxu0 0.0
        %652 = vmatpush2.msra.mxu0 0.0
        %653 = vmatprep.subr.mxu0 0.0
        %654 = vmatpush2.msra.mxu0 0.0
        %655 = vmatprep.subr.mxu0 0.0
        %656 = vmatpush2.msra.mxu0 0.0
        %657 = vmatprep.mubr.f32.mxu0 0.0
        %658 = vmatmul.mubr.f32.gmra.mxu0 %v591
        %v659 = vpop.f32.mrf.mxu0
        %v660 = vadd.f32 0.0, %v659
        %v661 = vpop.f32.mrf.mxu0
        %662 = vdwg.mxu0
        %663 = vst.msk [vmem:[%s251] sm:$0xff] %vm501, %v660
        %s664 = sand.u32 %s130, 1
        %s665 = scalar_lea.sflag [#allocation3], %s664
        %s666 = sand.u32 %s130, 1
        %s667 = smul.addr %s666, 8
        %s668 = scalar_lea.vmem [#allocation2], %s667
        %s669 = sand.u32 %s156, 1
        %s670 = scalar_lea.sflag [#allocation5], %s669
        %s671 = sand.u32 %s156, 1
        %s672 = smul.addr %s671, 8
        %s673 = scalar_lea.vmem [#allocation4], %s672
        // Predicated region
        $region37: #{tpu_custom_call.1} parent=35 // pred_check
          %p674 = pneg %p140
        $region38: #{tpu_custom_call.1} parent=35 // pred_check_branch
          %676 = sbr.rel (%p674) target = $region40
        $region39: #{tpu_custom_call.1} parent=35 // pred_region
          %s678 = ssub.s32 128, 128
          %679 = vsyncadd %s665, %s678
          %s680 = smul.addr %s23, 128
          %s681 = scalar_lea.hbm %s4, %s680
          %s683 = sshll.u32 %s668, 4
          %s684 = int_to_ptr.vmem [resolvable:$true] %s683
          %686 = dma.vmem_to_hbm [thread:$0]  %s684, 128, %s681, %s665
        $region40: #{tpu_custom_call.1} parent=35 // pred_fallthru
          _
        // Predicated region
        $region41: #{tpu_custom_call.1} parent=35 // pred_check
          %p687 = pneg %p166
        $region42: #{tpu_custom_call.1} parent=35 // pred_check_branch
          %689 = sbr.rel (%p687) target = $region44
        $region43: #{tpu_custom_call.1} parent=35 // pred_region
          %s691 = ssub.s32 128, 128
          %692 = vsyncadd %s670, %s691
          %s693 = smul.addr %s23, 128
          %s694 = scalar_lea.hbm %s5, %s693
          %s696 = sshll.u32 %s673, 4
          %s697 = int_to_ptr.vmem [resolvable:$true] %s696
          %699 = dma.vmem_to_hbm [thread:$0]  %s697, 128, %s694, %s670
        $region44: #{tpu_custom_call.1} parent=35 // pred_fallthru
          _
      $region36: #{tpu_custom_call.1} parent=5 // pred_fallthru
        _
      %p700 = scmp.le.s32.totalorder 2, %s18
      // Predicated region
      $region45: #{tpu_custom_call.1} parent=5 // pred_check
        %p701 = pneg %p700
      $region46: #{tpu_custom_call.1} parent=5 // pred_check_branch
        %703 = sbr.rel (%p701) target = $region48
      $region47: #{tpu_custom_call.1} parent=5 // pred_region
        %s704 = ssub.s32 %s18, 2
        // Predicated region
        $region49: #{tpu_custom_call.1} parent=47 // pred_check
          %p705 = pneg %p146
        $region50: #{tpu_custom_call.1} parent=47 // pred_check_branch
          %707 = sbr.rel (%p705) target = $region52
        $region51: #{tpu_custom_call.1} parent=47 // pred_region
          %s708 = sand.u32 %s131, 1
          %s709 = scalar_lea.sflag [#allocation3], %s708
          %s710 = sand.u32 %s131, 1
          %s711 = smul.addr %s710, 8
          %s712 = scalar_lea.vmem [#allocation2], %s711
          %713 = dma.done %s709, 128
        $region52: #{tpu_custom_call.1} parent=47 // pred_fallthru
          _
        // Predicated region
        $region53: #{tpu_custom_call.1} parent=47 // pred_check
          %p714 = pneg %p172
        $region54: #{tpu_custom_call.1} parent=47 // pred_check_branch
          %716 = sbr.rel (%p714) target = $region56
        $region55: #{tpu_custom_call.1} parent=47 // pred_region
          %s717 = sand.u32 %s157, 1
          %s718 = scalar_lea.sflag [#allocation5], %s717
          %s719 = sand.u32 %s157, 1
          %s720 = smul.addr %s719, 8
          %s721 = scalar_lea.vmem [#allocation4], %s720
          %722 = dma.done %s718, 128
        $region56: #{tpu_custom_call.1} parent=47 // pred_fallthru
          _
      $region48: #{tpu_custom_call.1} parent=5 // pred_fallthru
        _
    $region6: #{tpu_custom_call.1} parent=1 // loop_footer
      %s22 = sadd.s32 1, %s18
    $region7: #{tpu_custom_call.1} parent=1 // loop_footer_branch
      %17 = sbr.rel target = $region3
    $region8: #{tpu_custom_call.1} parent=1 // loop_exit
      _
    %723 = vsyncpa [#allocation3], 1
    %s724 = scalar_lea.sflag [#allocation3], 1
    %725 = vsyncpa %s724, 1
    %726 = vsyncpa [#allocation5], 1
    %s727 = scalar_lea.sflag [#allocation5], 1
    %728 = vsyncpa %s727, 1

</llo_original>
